<compile_context>
chip_gen: v6e
topology: v6e:2x2x1
jax: 0.10.0
libtpu: 0.0.40
codegen_flags: <defaults>
</compile_context>

<pallas_src>
import jax
import jax.numpy as jnp
from jax.experimental import pallas as pl
from jax.experimental.pallas import tpu as pltpu


# --------------------------------------------------------------------------- #
# Kernels
# --------------------------------------------------------------------------- #
def _fused_kernel(w1_ref, b1_ref, w2_ref, b2_ref, cur_ref, up_ref, out_ref):
    # cur/up/out: (k, C, HW) lane-dense blocks (whole samples).
    cur = cur_ref[...]
    up = up_ref[...]

    # Global average pool over the spatial (lane) axis.
    pooled = jnp.mean(cur, axis=-1).astype(jnp.float32)            # (k, C)

    # Two 1x1 convs (per-sample channel mixes) + ReLU + sigmoid.
    # h[i, co] = relu( sum_ci pooled[i, ci] * w1[co, ci] + b1[co] )
    # Done as broadcast-multiply + lane-reduce: k*C*C flops on idle VPU/XLU
    # slots of this memory-bound kernel; avoids a sub-tile MXU matmul.
    h = jnp.sum(pooled[:, None, :] * w1_ref[...][None, :, :], axis=-1) + b1_ref[...]
    h = jnp.maximum(h, 0.0)
    z = jnp.sum(h[:, None, :] * w2_ref[...][None, :, :], axis=-1) + b2_ref[...]
    alpha = 1.0 / (1.0 + jnp.exp(-z))                               # (k, C) f32

    a = alpha[:, :, None].astype(cur.dtype)                         # bcast over HW
    out_ref[...] = (up + a * (cur - up)).astype(out_ref.dtype)


def _blend_kernel(alpha_ref, cur_ref, up_ref, out_ref):
    # alpha: (TR, 1) per-row gate; cur/up/out: (TR, TL) lane-dense tiles.
    a = alpha_ref[...]
    cur = cur_ref[...]
    up = up_ref[...]
    out_ref[...] = (up + a * (cur - up)).astype(out_ref.dtype)


# --------------------------------------------------------------------------- #
# Wrapper
# --------------------------------------------------------------------------- #
def _vmem_budget():
    """Per-generation VMEM limit and per-stream block-byte target."""
    try:
        cap = int(pltpu.get_tpu_info().vmem_capacity_bytes)
    except Exception:
        cap = 64 * 1024 * 1024  # conservative default (v7x per-TC VMEM)
    vmem_limit = min(cap * 3 // 4, 96 * 1024 * 1024)
    # 3 big streams (cur, up, out) x 2 pipeline buffers each, plus headroom.
    target_block_bytes = min(8 * 1024 * 1024, vmem_limit // 8)
    return vmem_limit, target_block_bytes


def _fused_path(current, upsampled, w1, b1, w2, b2, N, C, HW, dtype,
                target_block_bytes, vmem_limit):
    itemsize = dtype.itemsize
    sample_bytes = C * HW * itemsize

    # Samples per block: as many as fit the budget, but keep enough grid steps
    # (>=2, ideally >=8) so v7x can shard the grid across both TensorCores.
    k_fit = max(1, target_block_bytes // sample_bytes)
    if N >= 8:
        k_grid = max(1, N // 8)
    elif N >= 2:
        k_grid = max(1, N // 2)
    else:
        k_grid = 1
    k_cap = max(1, min(k_fit, k_grid, N))
    k = 1
    for cand in range(k_cap, 0, -1):
        if N % cand == 0:
            k = cand
            break

    cur3 = current.reshape(N, C, HW)      # contiguous reshape -> lane-dense slab
    up3 = upsampled.reshape(N, C, HW)
    w1f = w1.astype(jnp.float32)          # (C_out, C_in)
    w2f = w2.astype(jnp.float32)
    b1f = b1.reshape(1, C).astype(jnp.float32)
    b2f = b2.reshape(1, C).astype(jnp.float32)

    big_spec = pl.BlockSpec((k, C, HW), lambda n: (n, 0, 0))
    w_spec = pl.BlockSpec((C, C), lambda n: (0, 0))
    b_spec = pl.BlockSpec((1, C), lambda n: (0, 0))

    out3 = pl.pallas_call(
        _fused_kernel,
        out_shape=jax.ShapeDtypeStruct((N, C, HW), dtype),
        grid_spec=pltpu.PrefetchScalarGridSpec(
            num_scalar_prefetch=0,
            grid=(N // k,),
            in_specs=[w_spec, b_spec, w_spec, b_spec, big_spec, big_spec],
            out_specs=big_spec,
        ),
        compiler_params=pltpu.CompilerParams(
            dimension_semantics=("parallel",),
            vmem_limit_bytes=vmem_limit,
        ),
    )(w1f, b1f, w2f, b2f, cur3, up3)
    return out3


def _fallback_path(current, upsampled, w1, b1, w2, b2, N, C, HW, dtype,
                   target_block_bytes, vmem_limit):
    itemsize = dtype.itemsize

    # Squeeze-excite hoisted to plain JAX (tiny batched matmuls).
    pooled = jnp.mean(current, axis=(2, 3)).astype(jnp.float32)          # (N, C)
    h = jnp.maximum(pooled @ w1.astype(jnp.float32).T + b1.astype(jnp.float32), 0.0)
    alpha = jax.nn.sigmoid(h @ w2.astype(jnp.float32).T + b2.astype(jnp.float32))

    R = N * C
    cur2 = current.reshape(R, HW)
    up2 = upsampled.reshape(R, HW)
    alpha2 = alpha.reshape(R, 1).astype(dtype)

    # Lane tile: prefer the full row (one contiguous DMA per row block); only
    # tile lanes when 8 full rows would overflow the block budget.
    TL = HW
    if HW % 128 == 0 and HW * itemsize * 8 > target_block_bytes:
        TL = 128
        for cand in (65536, 32768, 16384, 8192, 4096, 2048, 1024, 512, 256, 128):
            if HW % cand == 0 and cand * itemsize * 8 <= target_block_bytes:
                TL = cand
                break

    # Row tile: a multiple of 8 that divides R (no padding of the big tensors);
    # cap so at least 2 row blocks exist when R allows (v7x core sharding).
    rows_budget = max(8, (target_block_bytes // (TL * itemsize)) // 8 * 8)
    if R >= 16:
        rows_budget = min(rows_budget, max(8, (R // 2) // 8 * 8))
    TR = None
    for cand in range(min(rows_budget, (R // 8) * 8), 0, -8):
        if R % cand == 0:
            TR = cand
            break
    R_work = R
    if TR is None:
        # Rare corner: N*C not a multiple of 8.
        if R * TL * itemsize <= target_block_bytes:
            TR = R                              # full row-extent block is legal
        else:
            pad = (-R) % 8                      # <= 7 rows: negligible traffic
            cur2 = jnp.pad(cur2, ((0, pad), (0, 0)))
            up2 = jnp.pad(up2, ((0, pad), (0, 0)))
            alpha2 = jnp.pad(alpha2, ((0, pad), (0, 0)))
            R_work = R + pad
            TR = 8
            for cand in range(min(rows_budget, R_work), 7, -8):
                if R_work % cand == 0:
                    TR = cand
                    break

    grid = (R_work // TR, HW // TL)
    io_spec = pl.BlockSpec((TR, TL), lambda r, l: (r, l))
    a_spec = pl.BlockSpec((TR, 1), lambda r, l: (r, 0))

    out2 = pl.pallas_call(
        _blend_kernel,
        out_shape=jax.ShapeDtypeStruct((R_work, HW), dtype),
        grid_spec=pltpu.PrefetchScalarGridSpec(
            num_scalar_prefetch=0,
            grid=grid,
            in_specs=[a_spec, io_spec, io_spec],
            out_specs=io_spec,
        ),
        compiler_params=pltpu.CompilerParams(
            dimension_semantics=("parallel", "parallel"),
            vmem_limit_bytes=vmem_limit,
        ),
    )(alpha2, cur2, up2)
    if R_work != R:
        out2 = out2[:R]
    return out2


def adaptive_feature_fusion(current, upsampled, w1, b1, w2, b2, *,
                            _force_fallback=False):
    """current/upsampled: (N, C, H, W). w1/w2: (C, C) 1x1-conv weights, b1/b2: (C,)."""
    N, C, H, W = current.shape
    HW = H * W
    dtype = current.dtype
    vmem_limit, target_block_bytes = _vmem_budget()

    sample_bytes = C * HW * dtype.itemsize
    if not _force_fallback and sample_bytes <= target_block_bytes:
        out = _fused_path(current, upsampled, w1, b1, w2, b2, N, C, HW, dtype,
                          target_block_bytes, vmem_limit)
    else:
        out = _fallback_path(current, upsampled, w1, b1, w2, b2, N, C, HW, dtype,
                             target_block_bytes, vmem_limit)
    return out.reshape(N, C, H, W)


# --------------------------------------------------------------------------- #
# Reference & test
# --------------------------------------------------------------------------- #
def _reference(current, upsampled, w1, b1, w2, b2):
    pooled = jnp.mean(current, axis=(2, 3))                      # (N, C)
    h = jnp.maximum(pooled @ w1.T + b1, 0.0)                     # (N, C)
    alpha = jax.nn.sigmoid(h @ w2.T + b2)[:, :, None, None]      # (N, C, 1, 1)
    return alpha * current + (1.0 - alpha) * upsampled


if __name__ == "__main__":
    key = jax.random.PRNGKey(0)
    k1, k2, k3, k4, k5, k6 = jax.random.split(key, 6)

    N, C, H, W = 2, 4, 16, 16
    current = jax.random.normal(k1, (N, C, H, W), dtype=jnp.float32)
    upsampled = jax.random.normal(k2, (N, C, H, W), dtype=jnp.float32)

    # Parameters of the two 1x1 convs: (C, C) weight + (C,) bias each.
    w1 = jax.random.normal(k3, (C, C), dtype=jnp.float32) * 0.2
    b1 = jax.random.normal(k4, (C,), dtype=jnp.float32) * 0.1
    w2 = jax.random.normal(k5, (C, C), dtype=jnp.float32) * 0.2
    b2 = jax.random.normal(k6, (C,), dtype=jnp.float32) * 0.1

    ref = _reference(current, upsampled, w1, b1, w2, b2)

    # Fused (single-HBM-pass) path.
    out = adaptive_feature_fusion(current, upsampled, w1, b1, w2, b2)
    out = jax.block_until_ready(out)
    assert out.shape == (N, C, H, W)
    assert jnp.allclose(out, ref, atol=1e-5, rtol=1e-5), "fused path mismatch"

    # Also exercise the large-feature-map fallback path on the same inputs.
    out_fb = adaptive_feature_fusion(current, upsampled, w1, b1, w2, b2,
                                     _force_fallback=True)
    out_fb = jax.block_until_ready(out_fb)
    assert jnp.allclose(out_fb, ref, atol=1e-5, rtol=1e-5), "fallback path mismatch"

    print("KERNEL_OK")
</pallas_src>

<mosaic_0001>
module attributes {stable_mosaic.version = 11 : i64} {
  func.func @_fused_kernel(%arg0: i32, %arg1: memref<4x4xf32, #tpu.memory_space<vmem>>, %arg2: memref<1x4xf32, #tpu.memory_space<vmem>>, %arg3: memref<4x4xf32, #tpu.memory_space<vmem>>, %arg4: memref<1x4xf32, #tpu.memory_space<vmem>>, %arg5: memref<1x4x256xf32, #tpu.memory_space<vmem>>, %arg6: memref<1x4x256xf32, #tpu.memory_space<vmem>>, %arg7: memref<1x4x256xf32, #tpu.memory_space<vmem>>) attributes {dimension_semantics = [#tpu.dimension_semantics<parallel>], iteration_bounds = array<i64: 2>, scalar_prefetch = 0 : i64, scratch_operands = 0 : i64, tpu.core_type = #tpu.core_type<tc>, window_params = [{pipeline_mode = #tpu.pipeline_mode<synchronous>, transform_indices = @transform_0, window_bounds = array<i64: 4, 4>}, {pipeline_mode = #tpu.pipeline_mode<synchronous>, transform_indices = @transform_1, window_bounds = array<i64: 1, 4>}, {pipeline_mode = #tpu.pipeline_mode<synchronous>, transform_indices = @transform_2, window_bounds = array<i64: 4, 4>}, {pipeline_mode = #tpu.pipeline_mode<synchronous>, transform_indices = @transform_3, window_bounds = array<i64: 1, 4>}, {transform_indices = @transform_4, window_bounds = array<i64: 1, 4, 256>}, {transform_indices = @transform_5, window_bounds = array<i64: 1, 4, 256>}, {transform_indices = @transform_6, window_bounds = array<i64: 1, 4, 256>}]} {
    %c0 = arith.constant 0 : index
    %c0_0 = arith.constant 0 : index
    %c0_1 = arith.constant 0 : index
    %0 = vector.load %arg5[%c0, %c0_0, %c0_1] : memref<1x4x256xf32, #tpu.memory_space<vmem>>, vector<1x4x256xf32>
    %c0_2 = arith.constant 0 : index
    %c0_3 = arith.constant 0 : index
    %c0_4 = arith.constant 0 : index
    %1 = vector.load %arg6[%c0_2, %c0_3, %c0_4] : memref<1x4x256xf32, #tpu.memory_space<vmem>>, vector<1x4x256xf32>
    %cst = arith.constant dense<0.000000e+00> : vector<1x4xf32>
    %2 = vector.multi_reduction <add>, %0, %cst [2] : vector<1x4x256xf32> to vector<1x4xf32>
    %cst_5 = arith.constant 2.560000e+02 : f32
    %3 = vector.broadcast %cst_5 : f32 to vector<1x4xf32>
    %4 = arith.divf %2, %3 : vector<1x4xf32>
    %5 = vector.shape_cast %4 : vector<1x4xf32> to vector<1x1x4xf32>
    %c0_6 = arith.constant 0 : index
    %c0_7 = arith.constant 0 : index
    %6 = vector.load %arg1[%c0_6, %c0_7] : memref<4x4xf32, #tpu.memory_space<vmem>>, vector<4x4xf32>
    %7 = vector.shape_cast %6 : vector<4x4xf32> to vector<1x4x4xf32>
    %8 = vector.broadcast %5 : vector<1x1x4xf32> to vector<1x4x4xf32>
    %9 = arith.mulf %8, %7 : vector<1x4x4xf32>
    %cst_8 = arith.constant dense<0.000000e+00> : vector<1x4xf32>
    %10 = vector.multi_reduction <add>, %9, %cst_8 [2] : vector<1x4x4xf32> to vector<1x4xf32>
    %c0_9 = arith.constant 0 : index
    %c0_10 = arith.constant 0 : index
    %11 = vector.load %arg2[%c0_9, %c0_10] : memref<1x4xf32, #tpu.memory_space<vmem>>, vector<1x4xf32>
    %12 = arith.addf %10, %11 : vector<1x4xf32>
    %cst_11 = arith.constant 0.000000e+00 : f32
    %13 = vector.broadcast %cst_11 : f32 to vector<1x4xf32>
    %14 = arith.maximumf %12, %13 : vector<1x4xf32>
    %15 = vector.shape_cast %14 : vector<1x4xf32> to vector<1x1x4xf32>
    %c0_12 = arith.constant 0 : index
    %c0_13 = arith.constant 0 : index
    %16 = vector.load %arg3[%c0_12, %c0_13] : memref<4x4xf32, #tpu.memory_space<vmem>>, vector<4x4xf32>
    %17 = vector.shape_cast %16 : vector<4x4xf32> to vector<1x4x4xf32>
    %18 = vector.broadcast %15 : vector<1x1x4xf32> to vector<1x4x4xf32>
    %19 = arith.mulf %18, %17 : vector<1x4x4xf32>
    %cst_14 = arith.constant dense<0.000000e+00> : vector<1x4xf32>
    %20 = vector.multi_reduction <add>, %19, %cst_14 [2] : vector<1x4x4xf32> to vector<1x4xf32>
    %c0_15 = arith.constant 0 : index
    %c0_16 = arith.constant 0 : index
    %21 = vector.load %arg4[%c0_15, %c0_16] : memref<1x4xf32, #tpu.memory_space<vmem>>, vector<1x4xf32>
    %22 = arith.addf %20, %21 : vector<1x4xf32>
    %cst_17 = arith.constant 0.000000e+00 : f32
    %23 = vector.broadcast %cst_17 : f32 to vector<1x4xf32>
    %24 = arith.subf %23, %22 : vector<1x4xf32>
    %25 = math.exp %24 : vector<1x4xf32>
    %cst_18 = arith.constant 1.000000e+00 : f32
    %26 = vector.broadcast %cst_18 : f32 to vector<1x4xf32>
    %27 = arith.addf %26, %25 : vector<1x4xf32>
    %cst_19 = arith.constant 1.000000e+00 : f32
    %28 = vector.broadcast %cst_19 : f32 to vector<1x4xf32>
    %29 = arith.divf %28, %27 : vector<1x4xf32>
    %30 = vector.shape_cast %29 : vector<1x4xf32> to vector<1x4x1xf32>
    %31 = arith.subf %0, %1 : vector<1x4x256xf32>
    %32 = vector.broadcast %30 : vector<1x4x1xf32> to vector<1x4x256xf32>
    %33 = arith.mulf %32, %31 : vector<1x4x256xf32>
    %34 = arith.addf %1, %33 : vector<1x4x256xf32>
    %c0_20 = arith.constant 0 : index
    %c0_21 = arith.constant 0 : index
    %c0_22 = arith.constant 0 : index
    %35 = vector.load %arg7[%c0_20, %c0_21, %c0_22] : memref<1x4x256xf32, #tpu.memory_space<vmem>>, vector<1x4x256xf32>
    tpu.vector_store %arg7[%c0_20, %c0_21, %c0_22], %34 {strides = array<i32>} : memref<1x4x256xf32, #tpu.memory_space<vmem>>, vector<1x4x256xf32>,
    return
  }
  func.func @transform_0(%arg0: i32) -> (i32, i32) {
    %c0_i32 = arith.constant 0 : i32
    %c0_i32_0 = arith.constant 0 : i32
    %c0_i32_1 = arith.constant 0 : i32
    return %c0_i32, %c0_i32_0 : i32, i32
  }
  func.func @transform_1(%arg0: i32) -> (i32, i32) {
    %c0_i32 = arith.constant 0 : i32
    %c0_i32_0 = arith.constant 0 : i32
    %c0_i32_1 = arith.constant 0 : i32
    return %c0_i32, %c0_i32_0 : i32, i32
  }
  func.func @transform_2(%arg0: i32) -> (i32, i32) {
    %c0_i32 = arith.constant 0 : i32
    %c0_i32_0 = arith.constant 0 : i32
    %c0_i32_1 = arith.constant 0 : i32
    return %c0_i32, %c0_i32_0 : i32, i32
  }
  func.func @transform_3(%arg0: i32) -> (i32, i32) {
    %c0_i32 = arith.constant 0 : i32
    %c0_i32_0 = arith.constant 0 : i32
    %c0_i32_1 = arith.constant 0 : i32
    return %c0_i32, %c0_i32_0 : i32, i32
  }
  func.func @transform_4(%arg0: i32) -> (i32, i32, i32) {
    %c0_i32 = arith.constant 0 : i32
    %c0_i32_0 = arith.constant 0 : i32
    %c0_i32_1 = arith.constant 0 : i32
    return %arg0, %c0_i32, %c0_i32_0 : i32, i32, i32
  }
  func.func @transform_5(%arg0: i32) -> (i32, i32, i32) {
    %c0_i32 = arith.constant 0 : i32
    %c0_i32_0 = arith.constant 0 : i32
    %c0_i32_1 = arith.constant 0 : i32
    return %arg0, %c0_i32, %c0_i32_0 : i32, i32, i32
  }
  func.func @transform_6(%arg0: i32) -> (i32, i32, i32) {
    %c0_i32 = arith.constant 0 : i32
    %c0_i32_0 = arith.constant 0 : i32
    %c0_i32_1 = arith.constant 0 : i32
    return %arg0, %c0_i32, %c0_i32_0 : i32, i32, i32
  }
}

</mosaic_0001>

<llo_original>
// kernel: tpu_custom_call.1
$region0: #{tpu_custom_call.1}
  #allocation0 [shape = 'u32[]', space=smem, size = 0x4, offset = 0x4, fixed_abs, tag = 'smem constant byte address 0x4 - core index']
  #allocation1 [shape = 'u32[144,128]{1,0:T(1,128)}', space=vmem, size = 0x12000, scoped, tag = 'internal scratch']
  %s0 = inlined_call_operand.hbm [shape: f32[4,4], index: 0, kind: input, shape index: {}]
  %s1 = inlined_call_operand.vmem [shape: f32[1,4], index: 1, kind: input, shape index: {}]
  %s2 = inlined_call_operand.hbm [shape: f32[4,4], index: 2, kind: input, shape index: {}]
  %s3 = inlined_call_operand.vmem [shape: f32[1,4], index: 3, kind: input, shape index: {}]
  %s4 = inlined_call_operand.hbm [shape: f32[2,4,256], index: 4, kind: input, shape index: {}]
  %s5 = inlined_call_operand.hbm [shape: f32[2,4,256], index: 5, kind: input, shape index: {}]
  %s6 = inlined_call_operand.hbm [shape: f32[2,4,256], index: 6, kind: output, shape index: {}]
  %s7 = sld [smem:[#allocation0]]
  $region73: #{tpu_custom_call.1} parent=0
    _
  %s9 = ssub.s32 1, %s7
  %s10 = scalar_select 0, %s9, %s7
  $region1: #{tpu_custom_call.1} parent=0
    #allocation2 [shape = 'u8[2048]{0}', space=vmem, size = 0x800, scoped, tag = 'input window, operand 0, single buffered']
    #allocation3 [shape = 's32[2]{0}', space=sflag, size = 0x8, scoped, tag = 'scoped memory for tpu_custom_call.1']
    #allocation4 [shape = 's32[2]{0}', space=sflag, size = 0x8, scoped, tag = 'scoped memory for tpu_custom_call.1']
    #allocation5 [shape = 'u8[2048]{0}', space=vmem, size = 0x800, scoped, tag = 'input window, operand 2, single buffered']
    #allocation6 [shape = 's32[1]{0}', space=sflag, size = 0x4, scoped, tag = 'scoped memory for tpu_custom_call.1']
    #allocation7 [shape = 'u8[8192]{0}', space=vmem, size = 0x2000, scoped, tag = 'input window, operand 4']
    #allocation8 [shape = 'u8[8192]{0}', space=vmem, size = 0x2000, scoped, tag = 'input window, operand 5']
    #allocation9 [shape = 'u8[8192]{0}', space=vmem, size = 0x2000, scoped, tag = 'output window, operand 0']
    %11 = vsyncpa [#allocation3], 0
    %12 = vsyncpa [#allocation6], 0
    %13 = vsyncpa [#allocation4], 0
    %s14 = scalar_lea.sflag [#allocation4], 1
    %15 = vsyncpa %s14, 0
    loop: start=0, step=1, limit=4
    $region2: #{tpu_custom_call.1} parent=1 // loop_pre_header
      _
    $region3: #{tpu_custom_call.1} parent=1 // loop_header
      %s17 = sphi 0, %s21
      %p18 = scmp.ge.s32.totalorder %s17, 4
      %s25 = sphi 0, %s25
      %s27 = sphi 0, %s25
      %s28 = sphi 0, %s27
      %s42 = sphi 0, %s28
      %s46 = sphi 0, %s46
      %s48 = sphi 0, %s46
      %s49 = sphi 0, %s48
      %s63 = sphi 0, %s49
      %s67 = sphi 0, %s67
      %s69 = sphi 0, %s67
      %s70 = sphi 0, %s69
      %s84 = sphi 0, %s70
      %s88 = sphi 0, %s88
      %s90 = sphi 0, %s88
      %s91 = sphi 0, %s90
      %s105 = sphi 0, %s91
      %s111 = sphi 0, %s113
      %s114 = sphi 0, %s111
      %s115 = sphi 0, %s114
      %s131 = sphi 0, %s115
      %s137 = sphi 0, %s139
      %s140 = sphi 0, %s137
      %s141 = sphi 0, %s140
      %s157 = sphi 0, %s141
      %s163 = sphi 0, %s165
      %s166 = sphi 0, %s163
      %s167 = sphi 0, %s166
      %s183 = sphi 0, %s167
    $region4: #{tpu_custom_call.1} parent=1 // loop_header_branch
      %20 = sbr.rel (%p18) target = $region8
    $region5: #{tpu_custom_call.1} parent=1 // loop_body
      %s22 = ssub.s32 %s17, 1
      %s23 = ssub.s32 %s17, 2
      %s24 = sadd.s32 %s17, 1
      %s26 = sadd.s32 %s25, 1
      %p29 = scmp.eq.s32.totalorder %s17, 1
      %p30 = scmp.ne.s32.totalorder %s25, %s27
      %p31 = scmp.eq.s32.totalorder %s17, 0
      %p32 = por %p30, %p31
      %p33 = scmp.ne.s32.totalorder %s25, %s27
      %p34 = scmp.eq.s32.totalorder %s22, 1
      %p35 = por %p33, %p34
      %p36 = scmp.ne.s32.totalorder %s27, %s28
      %p37 = scmp.eq.s32.totalorder %s22, 0
      %p38 = por %p36, %p37
      %p39 = scmp.ne.s32.totalorder %s27, %s28
      %p40 = scmp.eq.s32.totalorder %s23, 1
      %p41 = por %p39, %p40
      %p43 = scmp.ne.s32.totalorder %s28, %s42
      %p44 = scmp.eq.s32.totalorder %s23, 0
      %p45 = por %p43, %p44
      %s47 = sadd.s32 %s46, 1
      %p50 = scmp.eq.s32.totalorder %s17, 1
      %p51 = scmp.ne.s32.totalorder %s46, %s48
      %p52 = scmp.eq.s32.totalorder %s17, 0
      %p53 = por %p51, %p52
      %p54 = scmp.ne.s32.totalorder %s46, %s48
      %p55 = scmp.eq.s32.totalorder %s22, 1
      %p56 = por %p54, %p55
      %p57 = scmp.ne.s32.totalorder %s48, %s49
      %p58 = scmp.eq.s32.totalorder %s22, 0
      %p59 = por %p57, %p58
      %p60 = scmp.ne.s32.totalorder %s48, %s49
      %p61 = scmp.eq.s32.totalorder %s23, 1
      %p62 = por %p60, %p61
      %p64 = scmp.ne.s32.totalorder %s49, %s63
      %p65 = scmp.eq.s32.totalorder %s23, 0
      %p66 = por %p64, %p65
      %s68 = sadd.s32 %s67, 1
      %p71 = scmp.eq.s32.totalorder %s17, 1
      %p72 = scmp.ne.s32.totalorder %s67, %s69
      %p73 = scmp.eq.s32.totalorder %s17, 0
      %p74 = por %p72, %p73
      %p75 = scmp.ne.s32.totalorder %s67, %s69
      %p76 = scmp.eq.s32.totalorder %s22, 1
      %p77 = por %p75, %p76
      %p78 = scmp.ne.s32.totalorder %s69, %s70
      %p79 = scmp.eq.s32.totalorder %s22, 0
      %p80 = por %p78, %p79
      %p81 = scmp.ne.s32.totalorder %s69, %s70
      %p82 = scmp.eq.s32.totalorder %s23, 1
      %p83 = por %p81, %p82
      %p85 = scmp.ne.s32.totalorder %s70, %s84
      %p86 = scmp.eq.s32.totalorder %s23, 0
      %p87 = por %p85, %p86
      %s89 = sadd.s32 %s88, 1
      %p92 = scmp.eq.s32.totalorder %s17, 1
      %p93 = scmp.ne.s32.totalorder %s88, %s90
      %p94 = scmp.eq.s32.totalorder %s17, 0
      %p95 = por %p93, %p94
      %p96 = scmp.ne.s32.totalorder %s88, %s90
      %p97 = scmp.eq.s32.totalorder %s22, 1
      %p98 = por %p96, %p97
      %p99 = scmp.ne.s32.totalorder %s90, %s91
      %p100 = scmp.eq.s32.totalorder %s22, 0
      %p101 = por %p99, %p100
      %p102 = scmp.ne.s32.totalorder %s90, %s91
      %p103 = scmp.eq.s32.totalorder %s23, 1
      %p104 = por %p102, %p103
      %p106 = scmp.ne.s32.totalorder %s91, %s105
      %p107 = scmp.eq.s32.totalorder %s23, 0
      %p108 = por %p106, %p107
      %s109 = ssub.s32 %s17, %s24
      %p110 = scmp.eq.s32.totalorder %s109, 0
      %s112 = sadd.s32 %s111, 1
      %s113 = scalar_select %p110, %s111, %s112
      %p116 = pneg %p110
      %p117 = scmp.eq.s32.totalorder %s17, 1
      %p118 = por %p116, %p117
      %p119 = scmp.ne.s32.totalorder %s111, %s114
      %p120 = scmp.eq.s32.totalorder %s17, 0
      %p121 = por %p119, %p120
      %p122 = scmp.ne.s32.totalorder %s111, %s114
      %p123 = scmp.eq.s32.totalorder %s22, 1
      %p124 = por %p122, %p123
      %p125 = scmp.ne.s32.totalorder %s114, %s115
      %p126 = scmp.eq.s32.totalorder %s22, 0
      %p127 = por %p125, %p126
      %p128 = scmp.ne.s32.totalorder %s114, %s115
      %p129 = scmp.eq.s32.totalorder %s23, 1
      %p130 = por %p128, %p129
      %p132 = scmp.ne.s32.totalorder %s115, %s131
      %p133 = scmp.eq.s32.totalorder %s23, 0
      %p134 = por %p132, %p133
      %s135 = ssub.s32 %s17, %s24
      %p136 = scmp.eq.s32.totalorder %s135, 0
      %s138 = sadd.s32 %s137, 1
      %s139 = scalar_select %p136, %s137, %s138
      %p142 = pneg %p136
      %p143 = scmp.eq.s32.totalorder %s17, 1
      %p144 = por %p142, %p143
      %p145 = scmp.ne.s32.totalorder %s137, %s140
      %p146 = scmp.eq.s32.totalorder %s17, 0
      %p147 = por %p145, %p146
      %p148 = scmp.ne.s32.totalorder %s137, %s140
      %p149 = scmp.eq.s32.totalorder %s22, 1
      %p150 = por %p148, %p149
      %p151 = scmp.ne.s32.totalorder %s140, %s141
      %p152 = scmp.eq.s32.totalorder %s22, 0
      %p153 = por %p151, %p152
      %p154 = scmp.ne.s32.totalorder %s140, %s141
      %p155 = scmp.eq.s32.totalorder %s23, 1
      %p156 = por %p154, %p155
      %p158 = scmp.ne.s32.totalorder %s141, %s157
      %p159 = scmp.eq.s32.totalorder %s23, 0
      %p160 = por %p158, %p159
      %s161 = ssub.s32 %s17, %s24
      %p162 = scmp.eq.s32.totalorder %s161, 0
      %s164 = sadd.s32 %s163, 1
      %s165 = scalar_select %p162, %s163, %s164
      %p168 = pneg %p162
      %p169 = scmp.eq.s32.totalorder %s17, 1
      %p170 = por %p168, %p169
      %p171 = scmp.ne.s32.totalorder %s163, %s166
      %p172 = scmp.eq.s32.totalorder %s17, 0
      %p173 = por %p171, %p172
      %p174 = scmp.ne.s32.totalorder %s163, %s166
      %p175 = scmp.eq.s32.totalorder %s22, 1
      %p176 = por %p174, %p175
      %p177 = scmp.ne.s32.totalorder %s166, %s167
      %p178 = scmp.eq.s32.totalorder %s22, 0
      %p179 = por %p177, %p178
      %p180 = scmp.ne.s32.totalorder %s166, %s167
      %p181 = scmp.eq.s32.totalorder %s23, 1
      %p182 = por %p180, %p181
      %p184 = scmp.ne.s32.totalorder %s167, %s183
      %p185 = scmp.eq.s32.totalorder %s23, 0
      %p186 = por %p184, %p185
      %p187 = scmp.le.s32.totalorder 1, %s17
      %p188 = scmp.lt.s32.totalorder %s17, 3
      %p189 = pnand %p187, %p188
      %p190 = pneg %p189
      // Predicated region
      $region9: #{tpu_custom_call.1} parent=5 // pred_check
        _
      $region10: #{tpu_custom_call.1} parent=5 // pred_check_branch
        %192 = sbr.rel (%p189) target = $region12
      $region11: #{tpu_custom_call.1} parent=5 // pred_region
        %s193 = ssub.s32 %s17, 1
        // Predicated region
        $region13: #{tpu_custom_call.1} parent=11 // pred_check
          %p194 = pneg %p38
        $region14: #{tpu_custom_call.1} parent=11 // pred_check_branch
          %196 = sbr.rel (%p194) target = $region16
        $region15: #{tpu_custom_call.1} parent=11 // pred_region
          %s198 = ssub.s32 64, 64
          %199 = vsyncadd [#allocation3], %s198
          %s201 = sshll.u32 [#allocation2], 4
          %s202 = int_to_ptr.vmem [resolvable:$true] %s201
          %204 = dma.hbm_to_vmem [thread:$0]  %s0, 64, %s202, [#allocation3]
        $region16: #{tpu_custom_call.1} parent=11 // pred_fallthru
          _
        // Predicated region
        $region17: #{tpu_custom_call.1} parent=11 // pred_check
          %p205 = pneg %p59
        $region18: #{tpu_custom_call.1} parent=11 // pred_check_branch
          %207 = sbr.rel (%p205) target = $region20
        $region19: #{tpu_custom_call.1} parent=11 // pred_region
          _
        $region20: #{tpu_custom_call.1} parent=11 // pred_fallthru
          _
        // Predicated region
        $region21: #{tpu_custom_call.1} parent=11 // pred_check
          %p208 = pneg %p80
        $region22: #{tpu_custom_call.1} parent=11 // pred_check_branch
          %210 = sbr.rel (%p208) target = $region24
        $region23: #{tpu_custom_call.1} parent=11 // pred_region
          %s212 = ssub.s32 64, 64
          %213 = vsyncadd [#allocation6], %s212
          %s215 = sshll.u32 [#allocation5], 4
          %s216 = int_to_ptr.vmem [resolvable:$true] %s215
          %218 = dma.hbm_to_vmem [thread:$0]  %s2, 64, %s216, [#allocation6]
        $region24: #{tpu_custom_call.1} parent=11 // pred_fallthru
          _
        // Predicated region
        $region25: #{tpu_custom_call.1} parent=11 // pred_check
          %p219 = pneg %p101
        $region26: #{tpu_custom_call.1} parent=11 // pred_check_branch
          %221 = sbr.rel (%p219) target = $region28
        $region27: #{tpu_custom_call.1} parent=11 // pred_region
          _
        $region28: #{tpu_custom_call.1} parent=11 // pred_fallthru
          _
      $region12: #{tpu_custom_call.1} parent=5 // pred_fallthru
        _
      %p222 = scmp.lt.s32.totalorder %s17, 2
      // Predicated region
      $region29: #{tpu_custom_call.1} parent=5 // pred_check
        %p223 = pneg %p222
      $region30: #{tpu_custom_call.1} parent=5 // pred_check_branch
        %225 = sbr.rel (%p223) target = $region32
      $region31: #{tpu_custom_call.1} parent=5 // pred_region
        // Predicated region
        $region33: #{tpu_custom_call.1} parent=31 // pred_check
          %p226 = pneg %p121
        $region34: #{tpu_custom_call.1} parent=31 // pred_check_branch
          %228 = sbr.rel (%p226) target = $region36
        $region35: #{tpu_custom_call.1} parent=31 // pred_region
          %s229 = sand.u32 %s17, 1
          %s230 = scalar_lea.sflag [#allocation3], %s229
          %s231 = sand.u32 %s111, 1
          %s232 = smul.addr %s231, 8
          %s233 = scalar_lea.vmem [#allocation7], %s232
          %s235 = ssub.s32 128, 128
          %236 = vsyncadd %s230, %s235
          %s237 = smul.addr %s17, 2
          %s238 = smul.addr %s237, 64
          %s239 = scalar_lea.hbm %s4, %s238
          %s241 = sshll.u32 %s233, 4
          %s242 = int_to_ptr.vmem [resolvable:$true] %s241
          %244 = dma.hbm_to_vmem [thread:$0]  %s239, 128, %s242, %s230
        $region36: #{tpu_custom_call.1} parent=31 // pred_fallthru
          _
        // Predicated region
        $region37: #{tpu_custom_call.1} parent=31 // pred_check
          %p245 = pneg %p147
        $region38: #{tpu_custom_call.1} parent=31 // pred_check_branch
          %247 = sbr.rel (%p245) target = $region40
        $region39: #{tpu_custom_call.1} parent=31 // pred_region
          %s248 = sand.u32 %s17, 1
          %s249 = scalar_lea.sflag [#allocation3], %s248
          %s250 = sand.u32 %s137, 1
          %s251 = smul.addr %s250, 8
          %s252 = scalar_lea.vmem [#allocation8], %s251
          %s254 = ssub.s32 128, 128
          %255 = vsyncadd %s249, %s254
          %s256 = smul.addr %s17, 2
          %s257 = smul.addr %s256, 64
          %s258 = scalar_lea.hbm %s5, %s257
          %s260 = sshll.u32 %s252, 4
          %s261 = int_to_ptr.vmem [resolvable:$true] %s260
          %263 = dma.hbm_to_vmem [thread:$0]  %s258, 128, %s261, %s249
        $region40: #{tpu_custom_call.1} parent=31 // pred_fallthru
          _
      $region32: #{tpu_custom_call.1} parent=5 // pred_fallthru
        _
      %p264 = scmp.le.s32.totalorder 1, %s17
      %p265 = scmp.lt.s32.totalorder %s17, 3
      %p266 = pnand %p264, %p265
      %p267 = pneg %p266
      // Predicated region
      $region41: #{tpu_custom_call.1} parent=5 // pred_check
        _
      $region42: #{tpu_custom_call.1} parent=5 // pred_check_branch
        %269 = sbr.rel (%p266) target = $region44
      $region43: #{tpu_custom_call.1} parent=5 // pred_region
        %s270 = ssub.s32 %s17, 1
        // Predicated region
        $region45: #{tpu_custom_call.1} parent=43 // pred_check
          %p271 = pneg %p38
        $region46: #{tpu_custom_call.1} parent=43 // pred_check_branch
          %273 = sbr.rel (%p271) target = $region48
        $region47: #{tpu_custom_call.1} parent=43 // pred_region
          %274 = dma.done [#allocation3], 64
        $region48: #{tpu_custom_call.1} parent=43 // pred_fallthru
          _
        // Predicated region
        $region49: #{tpu_custom_call.1} parent=43 // pred_check
          %p275 = pneg %p80
        $region50: #{tpu_custom_call.1} parent=43 // pred_check_branch
          %277 = sbr.rel (%p275) target = $region52
        $region51: #{tpu_custom_call.1} parent=43 // pred_region
          %278 = dma.done [#allocation6], 64
        $region52: #{tpu_custom_call.1} parent=43 // pred_fallthru
          _
        %s279 = sand.u32 %s22, 1
        %s280 = scalar_lea.sflag [#allocation3], %s279
        %s281 = sand.u32 %s114, 1
        %s282 = smul.addr %s281, 8
        %s283 = scalar_lea.vmem [#allocation7], %s282
        // Predicated region
        $region53: #{tpu_custom_call.1} parent=43 // pred_check
          %p284 = pneg %p127
        $region54: #{tpu_custom_call.1} parent=43 // pred_check_branch
          %286 = sbr.rel (%p284) target = $region56
        $region55: #{tpu_custom_call.1} parent=43 // pred_region
          %287 = dma.done %s280, 128
        $region56: #{tpu_custom_call.1} parent=43 // pred_fallthru
          _
        %s288 = sand.u32 %s22, 1
        %s289 = scalar_lea.sflag [#allocation3], %s288
        %s290 = sand.u32 %s140, 1
        %s291 = smul.addr %s290, 8
        %s292 = scalar_lea.vmem [#allocation8], %s291
        // Predicated region
        $region57: #{tpu_custom_call.1} parent=43 // pred_check
          %p293 = pneg %p153
        $region58: #{tpu_custom_call.1} parent=43 // pred_check_branch
          %295 = sbr.rel (%p293) target = $region60
        $region59: #{tpu_custom_call.1} parent=43 // pred_region
          %296 = dma.done %s289, 128
        $region60: #{tpu_custom_call.1} parent=43 // pred_fallthru
          _
        %p297 = pneg %p38
        %p298 = pneg %p35
        %p299 = pneg %p59
        %p300 = pneg %p56
        %p301 = pneg %p80
        %p302 = pneg %p77
        %p303 = pneg %p101
        %p304 = pneg %p98
        %s305 = sand.u32 %s22, 1
        %s306 = scalar_lea.sflag [#allocation3], %s305
        %s307 = sand.u32 %s114, 1
        %s308 = smul.addr %s307, 8
        %s309 = scalar_lea.vmem [#allocation7], %s308
        %p310 = pneg %p127
        %p311 = pneg %p124
        %s312 = sand.u32 %s22, 1
        %s313 = scalar_lea.sflag [#allocation3], %s312
        %s314 = sand.u32 %s140, 1
        %s315 = smul.addr %s314, 8
        %s316 = scalar_lea.vmem [#allocation8], %s315
        %p317 = pneg %p153
        %p318 = pneg %p150
        %p319 = pneg %p179
        %p320 = pneg %p176
        %s321 = sand.u32 %s166, 1
        %s322 = scalar_lea.sflag [#allocation4], %s321
        %s323 = sand.u32 %s166, 1
        %s324 = smul.addr %s323, 8
        %s325 = scalar_lea.vmem [#allocation9], %s324
        %v326 = vld [vmem:[%s283] sm:$0xff]
        %v327 = vld [vmem:[%s292] sm:$0xff]
        %v329 = vcombine.high %v326, %v326
        %vm331 = vcmask 1043456
        %v332 = vsel %vm331, %v326, 0.0
        %v333 = vsel %vm331, %v329, 0.0
        %v334 = vadd.f32 %v332, %v333
        %335 = vadd.xlane.f32.xlu0 %v334
        %v336 = vpop.xlane.xlu0 %335
        %v337 = vrcp.pop 256.0
        %v338 = vmul.f32 %v336, %v337
        %v339 = vld [vmem:[#allocation2] sm:$0xf]
        %v341 = vlaneseq
        %v342 = vshrl.u32 %v341, 7
        %v343 = vsub.s32 0, %v342
        %v344 = vrot.slane %v339, %v343
        %346 = vbcast.lane.b32.xlu0 %v344, 256
        %v347 = vpop.permute.xlu0 %346
        %v348 = vlaneseq
        %v349 = vshrl.u32 %v348, 7
        %v350 = vsub.s32 1, %v349
        %v351 = vrot.slane %v339, %v350
        %353 = vbcast.lane.b32.xlu0 %v351, 256
        %v354 = vpop.permute.xlu0 %353
        %v355 = vlaneseq
        %v356 = vshrl.u32 %v355, 7
        %v357 = vsub.s32 2, %v356
        %v358 = vrot.slane %v339, %v357
        %360 = vbcast.lane.b32.xlu0 %v358, 256
        %v361 = vpop.permute.xlu0 %360
        %v362 = vlaneseq
        %v363 = vshrl.u32 %v362, 7
        %v364 = vsub.s32 3, %v363
        %v365 = vrot.slane %v339, %v364
        %367 = vbcast.lane.b32.xlu0 %v365, 256
        %v368 = vpop.permute.xlu0 %367
        %v373 = vmul.f32 %v338, %v347
        %v374 = vmul.f32 %v338, %v354
        %v375 = vmul.f32 %v338, %v361
        %v376 = vmul.f32 %v338, %v368
        %381 = vset.pattern.permute.xlu0 0
        %382 = vperm.xlu0 %381, %v373
        %v383 = vpop.permute.xlu0 %382
        %384 = vset.pattern.permute.xlu0 0
        %385 = vperm.xlu0 %384, %v374
        %v386 = vpop.permute.xlu0 %385
        %387 = vset.pattern.permute.xlu0 0
        %388 = vperm.xlu0 %387, %v375
        %v389 = vpop.permute.xlu0 %388
        %390 = vset.pattern.permute.xlu0 0
        %391 = vperm.xlu0 %390, %v376
        %v392 = vpop.permute.xlu0 %391
        %v393 = vlaneseq
        %v394 = vand.u32 %v393, 127
        %v395 = vlaneseq
        %v396 = vshrl.u32 %v395, 7
        %v397 = vsub.s32 %v394, %v396
        %v398 = vrot.slane %v383, %v397
        %v399 = vlaneseq
        %v400 = vshrl.u32 %v399, 7
        %v401 = vsub.s32 %v394, %v400
        %v402 = vrot.slane %v386, %v401
        %v403 = vlaneseq
        %v404 = vshrl.u32 %v403, 7
        %v405 = vsub.s32 %v394, %v404
        %v406 = vrot.slane %v389, %v405
        %v407 = vlaneseq
        %v408 = vshrl.u32 %v407, 7
        %v409 = vsub.s32 %v394, %v408
        %v410 = vrot.slane %v392, %v409
        %vm411 = vcmask 1041409
        %v412 = vsel %vm411, %v402, %v398
        %vm413 = vcmask 1042434
        %v414 = vsel %vm413, %v406, %v412
        %vm415 = vcmask 1043459
        %v416 = vsel %vm415, %v410, %v414
        %vm418 = vcmask 27648
        %v419 = vsel %vm418, %v416, 0.0
        %420 = vadd.xlane.f32.xlu0 %v419
        %v421 = vpop.xlane.xlu0 %420
        %v422 = vld [vmem:[%s1] sm:$0x1]
        %v424 = vlaneseq
        %v425 = vshrl.u32 %v424, 7
        %v426 = vsub.s32 0, %v425
        %v427 = vrot.slane %v422, %v426
        %429 = vbcast.lane.b32.xlu0 %v427, 256
        %v430 = vpop.permute.xlu0 %429
        %v432 = vadd.f32 %v421, %v430
        %v433 = vmax.f32 %v432, 0.0
        %v434 = vld [vmem:[#allocation5] sm:$0xf]
        %v436 = vlaneseq
        %v437 = vshrl.u32 %v436, 7
        %v438 = vsub.s32 0, %v437
        %v439 = vrot.slane %v434, %v438
        %441 = vbcast.lane.b32.xlu0 %v439, 256
        %v442 = vpop.permute.xlu0 %441
        %v443 = vlaneseq
        %v444 = vshrl.u32 %v443, 7
        %v445 = vsub.s32 1, %v444
        %v446 = vrot.slane %v434, %v445
        %448 = vbcast.lane.b32.xlu0 %v446, 256
        %v449 = vpop.permute.xlu0 %448
        %v450 = vlaneseq
        %v451 = vshrl.u32 %v450, 7
        %v452 = vsub.s32 2, %v451
        %v453 = vrot.slane %v434, %v452
        %455 = vbcast.lane.b32.xlu0 %v453, 256
        %v456 = vpop.permute.xlu0 %455
        %v457 = vlaneseq
        %v458 = vshrl.u32 %v457, 7
        %v459 = vsub.s32 3, %v458
        %v460 = vrot.slane %v434, %v459
        %462 = vbcast.lane.b32.xlu0 %v460, 256
        %v463 = vpop.permute.xlu0 %462
        %v468 = vmul.f32 %v433, %v442
        %v469 = vmul.f32 %v433, %v449
        %v470 = vmul.f32 %v433, %v456
        %v471 = vmul.f32 %v433, %v463
        %476 = vset.pattern.permute.xlu0 0
        %477 = vperm.xlu0 %476, %v468
        %v478 = vpop.permute.xlu0 %477
        %479 = vset.pattern.permute.xlu0 0
        %480 = vperm.xlu0 %479, %v469
        %v481 = vpop.permute.xlu0 %480
        %482 = vset.pattern.permute.xlu0 0
        %483 = vperm.xlu0 %482, %v470
        %v484 = vpop.permute.xlu0 %483
        %485 = vset.pattern.permute.xlu0 0
        %486 = vperm.xlu0 %485, %v471
        %v487 = vpop.permute.xlu0 %486
        %v488 = vlaneseq
        %v489 = vshrl.u32 %v488, 7
        %v490 = vsub.s32 %v394, %v489
        %v491 = vrot.slane %v478, %v490
        %v492 = vlaneseq
        %v493 = vshrl.u32 %v492, 7
        %v494 = vsub.s32 %v394, %v493
        %v495 = vrot.slane %v481, %v494
        %v496 = vlaneseq
        %v497 = vshrl.u32 %v496, 7
        %v498 = vsub.s32 %v394, %v497
        %v499 = vrot.slane %v484, %v498
        %v500 = vlaneseq
        %v501 = vshrl.u32 %v500, 7
        %v502 = vsub.s32 %v394, %v501
        %v503 = vrot.slane %v487, %v502
        %v504 = vsel %vm411, %v495, %v491
        %v505 = vsel %vm413, %v499, %v504
        %v506 = vsel %vm415, %v503, %v505
        %v508 = vsel %vm418, %v506, 0.0
        %509 = vadd.xlane.f32.xlu0 %v508
        %v510 = vpop.xlane.xlu0 %509
        %v511 = vld [vmem:[%s3] sm:$0x1]
        %v513 = vlaneseq
        %v514 = vshrl.u32 %v513, 7
        %v515 = vsub.s32 0, %v514
        %v516 = vrot.slane %v511, %v515
        %518 = vbcast.lane.b32.xlu0 %v516, 256
        %v519 = vpop.permute.xlu0 %518
        %v521 = vadd.f32 %v510, %v519
        %v522 = vsub.f32 0.0, %v521
        %v523 = vmul.f32 %v522, 1.442695
        %v524 = vpow.pop %v523
        %v525 = vadd.f32 %v524, 1.0
        %v526 = vrcp.pop %v525
        %v527 = vmul.f32 1.0, %v526
        %v528 = vsub.f32 %v326, %v327
        %530 = vset.pattern.permute.xlu0 0
        %531 = vperm.xlu0 %530, %v527
        %v532 = vpop.permute.xlu0 %531
        %v535 = vcombine.high %v528, %v528
        %v537 = vmul.f32 %v532, %v528
        %v538 = vmul.f32 %v532, %v535
        %v541 = vcombine.low %v537, %v538
        %v543 = vadd.f32 %v327, %v541
        %544 = vst [vmem:[%s325] sm:$0xff] %v543
        %s545 = sand.u32 %s166, 1
        %s546 = scalar_lea.sflag [#allocation4], %s545
        %s547 = sand.u32 %s166, 1
        %s548 = smul.addr %s547, 8
        %s549 = scalar_lea.vmem [#allocation9], %s548
        // Predicated region
        $region61: #{tpu_custom_call.1} parent=43 // pred_check
          %p550 = pneg %p176
        $region62: #{tpu_custom_call.1} parent=43 // pred_check_branch
          %552 = sbr.rel (%p550) target = $region64
        $region63: #{tpu_custom_call.1} parent=43 // pred_region
          %s554 = ssub.s32 128, 128
          %555 = vsyncadd %s546, %s554
          %s556 = smul.addr %s22, 2
          %s557 = smul.addr %s556, 64
          %s558 = scalar_lea.hbm %s6, %s557
          %s560 = sshll.u32 %s549, 4
          %s561 = int_to_ptr.vmem [resolvable:$true] %s560
          %563 = dma.vmem_to_hbm [thread:$0]  %s561, 128, %s558, %s546
        $region64: #{tpu_custom_call.1} parent=43 // pred_fallthru
          _
      $region44: #{tpu_custom_call.1} parent=5 // pred_fallthru
        _
      %p564 = scmp.le.s32.totalorder 2, %s17
      // Predicated region
      $region65: #{tpu_custom_call.1} parent=5 // pred_check
        %p565 = pneg %p564
      $region66: #{tpu_custom_call.1} parent=5 // pred_check_branch
        %567 = sbr.rel (%p565) target = $region68
      $region67: #{tpu_custom_call.1} parent=5 // pred_region
        %s568 = ssub.s32 %s17, 2
        // Predicated region
        $region69: #{tpu_custom_call.1} parent=67 // pred_check
          %p569 = pneg %p182
        $region70: #{tpu_custom_call.1} parent=67 // pred_check_branch
          %571 = sbr.rel (%p569) target = $region72
        $region71: #{tpu_custom_call.1} parent=67 // pred_region
          %s572 = sand.u32 %s167, 1
          %s573 = scalar_lea.sflag [#allocation4], %s572
          %s574 = sand.u32 %s167, 1
          %s575 = smul.addr %s574, 8
          %s576 = scalar_lea.vmem [#allocation9], %s575
          %577 = dma.done %s573, 128
        $region72: #{tpu_custom_call.1} parent=67 // pred_fallthru
          _
      $region68: #{tpu_custom_call.1} parent=5 // pred_fallthru
        _
    $region6: #{tpu_custom_call.1} parent=1 // loop_footer
      %s21 = sadd.s32 1, %s17
    $region7: #{tpu_custom_call.1} parent=1 // loop_footer_branch
      %16 = sbr.rel target = $region3
    $region8: #{tpu_custom_call.1} parent=1 // loop_exit
      _
    %578 = vsyncpa [#allocation3], 1
    %s579 = scalar_lea.sflag [#allocation3], 1
    %580 = vsyncpa %s579, 1
    %581 = vsyncpa [#allocation6], 1
    %582 = vsyncpa [#allocation4], 1
    %s583 = scalar_lea.sflag [#allocation4], 1
    %584 = vsyncpa %s583, 1

</llo_original>
